<compile_context>
chip_gen: v5e
topology: v5e:2x2
jax: 0.10.0
libtpu: 0.0.40
codegen_flags: <defaults>
</compile_context>

<pallas_src>
import functools

import jax
import jax.numpy as jnp
from jax import lax
from jax.experimental import pallas as pl
from jax.experimental.pallas import tpu as pltpu

# ---------------- model hyper-parameters (small, deterministic) -------------
NUM_C = 16          # number of concepts
N_HIDDEN = 32       # embedding / knowledge-vector size
N_RNN_HIDDEN = 32   # LSTM hidden size
N_MLP_HIDDEN = 32   # skill-encoder hidden size
N_RNN_LAYERS = 1    # kernel implements a single LSTM layer
BATCH = 2
SEQ = 8


def kqn_kernel(xemb_ref, onehot_ref,
               wih_ref, whh_ref, brnn_ref,
               wlin_ref, blin_ref,
               w1_ref, b1_ref, w2_ref, b2_ref,
               logits_ref,
               *, batch_pad, seq_len):
    """Fused KQN forward (single invocation, whole arrays resident in VMEM).

    xemb_ref   : [L*Bp, n_hidden]   interaction embeddings, time-major, flat
    onehot_ref : [L*Bp, num_c]      one-hot of shifted questions, flat
    wih_ref    : [n_hidden, 4*H]    LSTM input weights (pre-transposed)
    whh_ref    : [H, 4*H]           LSTM recurrent weights (pre-transposed)
    brnn_ref   : [1, 4*H]           b_ih + b_hh
    wlin_ref   : [H, n_hidden]      output projection (pre-transposed)
    blin_ref   : [1, n_hidden]
    w1_ref     : [num_c, n_mlp]     skill encoder layer 1 (pre-transposed)
    b1_ref     : [1, n_mlp]
    w2_ref     : [n_mlp, n_hidden]  skill encoder layer 2 (pre-transposed)
    b2_ref     : [1, n_hidden]
    logits_ref : [L*Bp, 1]          sigmoid(sum(knowledge * skill, -1))
    """
    Bp = batch_pad
    L = seq_len
    H = whh_ref.shape[0]            # rnn hidden size (gates are 4*H wide)

    # ---- hoisted, loop-invariant loads ------------------------------------
    wih = wih_ref[...]
    whh = whh_ref[...]
    brnn = brnn_ref[...]

    # ---- input half of the LSTM gates for ALL timesteps (one MXU matmul) ---
    x_flat = xemb_ref[...]                                        # [L*Bp, nh]
    gates_x = (jnp.dot(x_flat, wih, preferred_element_type=jnp.float32)
               + brnn)                                            # [L*Bp, 4H]

    # ---- minimal LSTM recurrence, statically unrolled (L small & fixed) ----
    h = jnp.zeros((Bp, H), jnp.float32)
    c = jnp.zeros((Bp, H), jnp.float32)
    h_list = []
    for t in range(L):
        gx = gates_x[t * Bp:(t + 1) * Bp, :]                      # [Bp, 4H]
        gates = gx + jnp.dot(h, whh, preferred_element_type=jnp.float32)
        # Full-width nonlinearities (2 EUP pushes), then slice gate quarters.
        sig = jax.nn.sigmoid(gates)                               # [Bp, 4H]
        th = jnp.tanh(gates)                                      # [Bp, 4H]
        i_g = sig[:, 0 * H:1 * H]
        f_g = sig[:, 1 * H:2 * H]
        g_g = th[:, 2 * H:3 * H]
        o_g = sig[:, 3 * H:4 * H]
        c = f_g * c + i_g * g_g
        h = o_g * jnp.tanh(c)
        h_list.append(h)

    hs = jnp.concatenate(h_list, axis=0)                          # [L*Bp, H]

    # ---- knowledge encoder (batched over all timesteps) ---------------------
    # TODO(synk): Dropout omitted — forward evaluated in eval mode (identity).
    enc_know = (jnp.dot(hs, wlin_ref[...], preferred_element_type=jnp.float32)
                + blin_ref[...])                                  # [L*Bp, nh]

    # ---- skill encoder MLP (batched over all timesteps) ---------------------
    oh = onehot_ref[...]                                          # [L*Bp, nc]
    s1 = jnp.maximum(
        jnp.dot(oh, w1_ref[...], preferred_element_type=jnp.float32)
        + b1_ref[...], 0.0)
    s2 = jnp.maximum(
        jnp.dot(s1, w2_ref[...], preferred_element_type=jnp.float32)
        + b2_ref[...], 0.0)                                       # [L*Bp, nh]

    # F.normalize(p=2, dim=-1, eps=1e-12)  (rsqrt on squared norm, eps^2)
    sumsq = jnp.sum(s2 * s2, axis=-1, keepdims=True)
    enc_skill = s2 * lax.rsqrt(jnp.maximum(sumsq, 1e-24))

    # ---- logits: dot product + sigmoid, single store ------------------------
    logit = jnp.sum(enc_know * enc_skill, axis=-1, keepdims=True)  # [L*Bp, 1]
    logits_ref[...] = jax.nn.sigmoid(logit)


def kqn_forward(q, r, qshft, params):
    """Plain-JAX glue + Pallas kernel call.  Returns logits [B, L]."""
    B, L = q.shape
    B_pad = ((B + 7) // 8) * 8                      # pad batch to sublane width

    # embedding gather / one-hot (glue)
    x = q + NUM_C * r                               # [B, L]
    xemb = params["emb"][x]                         # [B, L, n_hidden]
    onehot = jax.nn.one_hot(qshft, NUM_C, dtype=jnp.float32)   # [B, L, num_c]

    # time-major, batch-padded, flattened to [L*B_pad, ·]
    xemb_t = jnp.swapaxes(xemb, 0, 1)               # [L, B, n_hidden]
    onehot_t = jnp.swapaxes(onehot, 0, 1)           # [L, B, num_c]
    pad = ((0, 0), (0, B_pad - B), (0, 0))
    xemb_flat = jnp.pad(xemb_t, pad).reshape(L * B_pad, N_HIDDEN)
    onehot_flat = jnp.pad(onehot_t, pad).reshape(L * B_pad, NUM_C)

    # pre-transpose weights so the kernel only does x @ W
    wih_t = params["w_ih"].T                        # [n_hidden, 4H]
    whh_t = params["w_hh"].T                        # [H, 4H]
    brnn = (params["b_ih"] + params["b_hh"]).reshape(1, -1)
    wlin_t = params["w_lin"].T                      # [H, n_hidden]
    blin = params["b_lin"].reshape(1, -1)
    w1_t = params["w1"].T                           # [num_c, n_mlp]
    b1 = params["b1"].reshape(1, -1)
    w2_t = params["w2"].T                           # [n_mlp, n_hidden]
    b2 = params["b2"].reshape(1, -1)

    inputs = (xemb_flat, onehot_flat, wih_t, whh_t, brnn,
              wlin_t, blin, w1_t, b1, w2_t, b2)

    vmem_spec = pl.BlockSpec(memory_space=pltpu.MemorySpace.VMEM)
    out = pl.pallas_call(
        functools.partial(kqn_kernel, batch_pad=B_pad, seq_len=L),
        out_shape=jax.ShapeDtypeStruct((L * B_pad, 1), jnp.float32),
        in_specs=[vmem_spec] * len(inputs),
        out_specs=vmem_spec,
    )(*inputs)

    # un-flatten / un-pad back to the PyTorch [B, L] layout
    logits = out.reshape(L, B_pad)[:, :B].T          # [B, L]
    return logits


def kqn_reference(q, r, qshft, params):
    """Pure-JAX reference (mirrors the PyTorch forward, eval mode)."""
    x = q + NUM_C * r
    xemb = params["emb"][x]                          # [B, L, n_hidden]
    B = q.shape[0]
    h0 = jnp.zeros((B, N_RNN_HIDDEN), jnp.float32)
    c0 = jnp.zeros((B, N_RNN_HIDDEN), jnp.float32)

    def cell(carry, x_t):
        h, c = carry
        gates = (x_t @ params["w_ih"].T + h @ params["w_hh"].T
                 + params["b_ih"] + params["b_hh"])
        i, f, g, o = jnp.split(gates, 4, axis=-1)
        i = jax.nn.sigmoid(i); f = jax.nn.sigmoid(f)
        g = jnp.tanh(g); o = jax.nn.sigmoid(o)
        c = f * c + i * g
        h = o * jnp.tanh(c)
        return (h, c), h

    _, hs = lax.scan(cell, (h0, c0), jnp.swapaxes(xemb, 0, 1))
    hs = jnp.swapaxes(hs, 0, 1)                      # [B, L, H_rnn]
    enc_know = hs @ params["w_lin"].T + params["b_lin"]
    oh = jax.nn.one_hot(qshft, NUM_C, dtype=jnp.float32)
    s1 = jax.nn.relu(oh @ params["w1"].T + params["b1"])
    s2 = jax.nn.relu(s1 @ params["w2"].T + params["b2"])
    norm = jnp.sqrt(jnp.sum(s2 * s2, axis=-1, keepdims=True))
    enc_skill = s2 / jnp.maximum(norm, 1e-12)
    return jax.nn.sigmoid(jnp.sum(enc_know * enc_skill, axis=-1))


def make_params(key):
    ks = jax.random.split(key, 12)
    u = lambda k, shape, s=0.1: jax.random.uniform(k, shape, jnp.float32, -s, s)
    return {
        "emb":   u(ks[0], (2 * NUM_C, N_HIDDEN)),
        "w_ih":  u(ks[1], (4 * N_RNN_HIDDEN, N_HIDDEN)),
        "w_hh":  u(ks[2], (4 * N_RNN_HIDDEN, N_RNN_HIDDEN)),
        "b_ih":  u(ks[3], (4 * N_RNN_HIDDEN,)),
        "b_hh":  u(ks[4], (4 * N_RNN_HIDDEN,)),
        "w_lin": u(ks[5], (N_HIDDEN, N_RNN_HIDDEN)),
        "b_lin": u(ks[6], (N_HIDDEN,)),
        "w1":    u(ks[7], (N_MLP_HIDDEN, NUM_C)),
        "b1":    u(ks[8], (N_MLP_HIDDEN,)),
        "w2":    u(ks[9], (N_HIDDEN, N_MLP_HIDDEN)),
        "b2":    u(ks[10], (N_HIDDEN,)),
    }


if __name__ == "__main__":
    key = jax.random.PRNGKey(0)
    kp, kq, kr, ks = jax.random.split(key, 4)

    params = make_params(kp)
    q = jax.random.randint(kq, (BATCH, SEQ), 0, NUM_C, dtype=jnp.int32)
    r = jax.random.randint(kr, (BATCH, SEQ), 0, 2, dtype=jnp.int32)
    qshft = jax.random.randint(ks, (BATCH, SEQ), 0, NUM_C, dtype=jnp.int32)

    logits = jax.block_until_ready(kqn_forward(q, r, qshft, params))
    ref = jax.block_until_ready(kqn_reference(q, r, qshft, params))

    assert logits.shape == (BATCH, SEQ)
    assert jnp.allclose(logits, ref, atol=1e-4, rtol=1e-4), (
        f"mismatch: max abs err {jnp.max(jnp.abs(logits - ref))}")
    print("KERNEL_OK")
</pallas_src>

<mosaic_0001>
module attributes {stable_mosaic.version = 11 : i64} {
  func.func @kqn_kernel(%arg0: memref<64x32xf32, #tpu.memory_space<vmem>>, %arg1: memref<64x16xf32, #tpu.memory_space<vmem>>, %arg2: memref<32x128xf32, #tpu.memory_space<vmem>>, %arg3: memref<32x128xf32, #tpu.memory_space<vmem>>, %arg4: memref<1x128xf32, #tpu.memory_space<vmem>>, %arg5: memref<32x32xf32, #tpu.memory_space<vmem>>, %arg6: memref<1x32xf32, #tpu.memory_space<vmem>>, %arg7: memref<16x32xf32, #tpu.memory_space<vmem>>, %arg8: memref<1x32xf32, #tpu.memory_space<vmem>>, %arg9: memref<32x32xf32, #tpu.memory_space<vmem>>, %arg10: memref<1x32xf32, #tpu.memory_space<vmem>>, %arg11: memref<64x1xf32, #tpu.memory_space<vmem>>) attributes {dimension_semantics = [], scalar_prefetch = 0 : i64, scratch_operands = 0 : i64, tpu.core_type = #tpu.core_type<tc>} {
    %c0 = arith.constant 0 : index
    %c0_0 = arith.constant 0 : index
    %0 = vector.load %arg2[%c0, %c0_0] : memref<32x128xf32, #tpu.memory_space<vmem>>, vector<32x128xf32>
    %c0_1 = arith.constant 0 : index
    %c0_2 = arith.constant 0 : index
    %1 = vector.load %arg3[%c0_1, %c0_2] : memref<32x128xf32, #tpu.memory_space<vmem>>, vector<32x128xf32>
    %c0_3 = arith.constant 0 : index
    %c0_4 = arith.constant 0 : index
    %2 = vector.load %arg4[%c0_3, %c0_4] : memref<1x128xf32, #tpu.memory_space<vmem>>, vector<1x128xf32>
    %c0_5 = arith.constant 0 : index
    %c0_6 = arith.constant 0 : index
    %3 = vector.load %arg0[%c0_5, %c0_6] : memref<64x32xf32, #tpu.memory_space<vmem>>, vector<64x32xf32>
    %cst = arith.constant dense<0.000000e+00> : vector<64x128xf32>
    %4 = tpu.matmul %3, %0, %cst {dimension_numbers = #tpu.dot_dimension_numbers<[1], [0], [0], [1], [0, 0, 1, 1], [], []>} : vector<64x32xf32>, vector<32x128xf32>, vector<64x128xf32> -> vector<64x128xf32>
    %5 = vector.broadcast %2 : vector<1x128xf32> to vector<64x128xf32>
    %6 = arith.addf %4, %5 : vector<64x128xf32>
    %cst_7 = arith.constant 0.000000e+00 : f32
    %7 = vector.broadcast %cst_7 : f32 to vector<8x32xf32>
    %cst_8 = arith.constant 0.000000e+00 : f32
    %8 = vector.broadcast %cst_8 : f32 to vector<8x32xf32>
    %9 = vector.extract_strided_slice %6 {offsets = [0, 0], sizes = [8, 128], strides = [1, 1]} : vector<64x128xf32> to vector<8x128xf32>
    %cst_9 = arith.constant dense<0.000000e+00> : vector<8x128xf32>
    %10 = tpu.matmul %7, %1, %cst_9 {dimension_numbers = #tpu.dot_dimension_numbers<[1], [0], [0], [1], [0, 0, 1, 1], [], []>} : vector<8x32xf32>, vector<32x128xf32>, vector<8x128xf32> -> vector<8x128xf32>
    %11 = arith.addf %9, %10 : vector<8x128xf32>
    %12 = arith.negf %11 : vector<8x128xf32>
    %13 = math.exp %12 : vector<8x128xf32>
    %cst_10 = arith.constant 1.000000e+00 : f32
    %14 = vector.broadcast %cst_10 : f32 to vector<8x128xf32>
    %15 = arith.addf %14, %13 : vector<8x128xf32>
    %16 = arith.divf %14, %15 : vector<8x128xf32>
    %17 = math.tanh %11 : vector<8x128xf32>
    %18 = vector.extract_strided_slice %16 {offsets = [0, 0], sizes = [8, 32], strides = [1, 1]} : vector<8x128xf32> to vector<8x32xf32>
    %19 = vector.extract_strided_slice %16 {offsets = [0, 32], sizes = [8, 32], strides = [1, 1]} : vector<8x128xf32> to vector<8x32xf32>
    %20 = vector.extract_strided_slice %17 {offsets = [0, 64], sizes = [8, 32], strides = [1, 1]} : vector<8x128xf32> to vector<8x32xf32>
    %21 = vector.extract_strided_slice %16 {offsets = [0, 96], sizes = [8, 32], strides = [1, 1]} : vector<8x128xf32> to vector<8x32xf32>
    %22 = arith.mulf %19, %8 : vector<8x32xf32>
    %23 = arith.mulf %18, %20 : vector<8x32xf32>
    %24 = arith.addf %22, %23 : vector<8x32xf32>
    %25 = math.tanh %24 : vector<8x32xf32>
    %26 = arith.mulf %21, %25 : vector<8x32xf32>
    %27 = vector.extract_strided_slice %6 {offsets = [8, 0], sizes = [8, 128], strides = [1, 1]} : vector<64x128xf32> to vector<8x128xf32>
    %cst_11 = arith.constant dense<0.000000e+00> : vector<8x128xf32>
    %28 = tpu.matmul %26, %1, %cst_11 {dimension_numbers = #tpu.dot_dimension_numbers<[1], [0], [0], [1], [0, 0, 1, 1], [], []>} : vector<8x32xf32>, vector<32x128xf32>, vector<8x128xf32> -> vector<8x128xf32>
    %29 = arith.addf %27, %28 : vector<8x128xf32>
    %30 = arith.negf %29 : vector<8x128xf32>
    %31 = math.exp %30 : vector<8x128xf32>
    %cst_12 = arith.constant 1.000000e+00 : f32
    %32 = vector.broadcast %cst_12 : f32 to vector<8x128xf32>
    %33 = arith.addf %32, %31 : vector<8x128xf32>
    %34 = arith.divf %32, %33 : vector<8x128xf32>
    %35 = math.tanh %29 : vector<8x128xf32>
    %36 = vector.extract_strided_slice %34 {offsets = [0, 0], sizes = [8, 32], strides = [1, 1]} : vector<8x128xf32> to vector<8x32xf32>
    %37 = vector.extract_strided_slice %34 {offsets = [0, 32], sizes = [8, 32], strides = [1, 1]} : vector<8x128xf32> to vector<8x32xf32>
    %38 = vector.extract_strided_slice %35 {offsets = [0, 64], sizes = [8, 32], strides = [1, 1]} : vector<8x128xf32> to vector<8x32xf32>
    %39 = vector.extract_strided_slice %34 {offsets = [0, 96], sizes = [8, 32], strides = [1, 1]} : vector<8x128xf32> to vector<8x32xf32>
    %40 = arith.mulf %37, %24 : vector<8x32xf32>
    %41 = arith.mulf %36, %38 : vector<8x32xf32>
    %42 = arith.addf %40, %41 : vector<8x32xf32>
    %43 = math.tanh %42 : vector<8x32xf32>
    %44 = arith.mulf %39, %43 : vector<8x32xf32>
    %45 = vector.extract_strided_slice %6 {offsets = [16, 0], sizes = [8, 128], strides = [1, 1]} : vector<64x128xf32> to vector<8x128xf32>
    %cst_13 = arith.constant dense<0.000000e+00> : vector<8x128xf32>
    %46 = tpu.matmul %44, %1, %cst_13 {dimension_numbers = #tpu.dot_dimension_numbers<[1], [0], [0], [1], [0, 0, 1, 1], [], []>} : vector<8x32xf32>, vector<32x128xf32>, vector<8x128xf32> -> vector<8x128xf32>
    %47 = arith.addf %45, %46 : vector<8x128xf32>
    %48 = arith.negf %47 : vector<8x128xf32>
    %49 = math.exp %48 : vector<8x128xf32>
    %cst_14 = arith.constant 1.000000e+00 : f32
    %50 = vector.broadcast %cst_14 : f32 to vector<8x128xf32>
    %51 = arith.addf %50, %49 : vector<8x128xf32>
    %52 = arith.divf %50, %51 : vector<8x128xf32>
    %53 = math.tanh %47 : vector<8x128xf32>
    %54 = vector.extract_strided_slice %52 {offsets = [0, 0], sizes = [8, 32], strides = [1, 1]} : vector<8x128xf32> to vector<8x32xf32>
    %55 = vector.extract_strided_slice %52 {offsets = [0, 32], sizes = [8, 32], strides = [1, 1]} : vector<8x128xf32> to vector<8x32xf32>
    %56 = vector.extract_strided_slice %53 {offsets = [0, 64], sizes = [8, 32], strides = [1, 1]} : vector<8x128xf32> to vector<8x32xf32>
    %57 = vector.extract_strided_slice %52 {offsets = [0, 96], sizes = [8, 32], strides = [1, 1]} : vector<8x128xf32> to vector<8x32xf32>
    %58 = arith.mulf %55, %42 : vector<8x32xf32>
    %59 = arith.mulf %54, %56 : vector<8x32xf32>
    %60 = arith.addf %58, %59 : vector<8x32xf32>
    %61 = math.tanh %60 : vector<8x32xf32>
    %62 = arith.mulf %57, %61 : vector<8x32xf32>
    %63 = vector.extract_strided_slice %6 {offsets = [24, 0], sizes = [8, 128], strides = [1, 1]} : vector<64x128xf32> to vector<8x128xf32>
    %cst_15 = arith.constant dense<0.000000e+00> : vector<8x128xf32>
    %64 = tpu.matmul %62, %1, %cst_15 {dimension_numbers = #tpu.dot_dimension_numbers<[1], [0], [0], [1], [0, 0, 1, 1], [], []>} : vector<8x32xf32>, vector<32x128xf32>, vector<8x128xf32> -> vector<8x128xf32>
    %65 = arith.addf %63, %64 : vector<8x128xf32>
    %66 = arith.negf %65 : vector<8x128xf32>
    %67 = math.exp %66 : vector<8x128xf32>
    %cst_16 = arith.constant 1.000000e+00 : f32
    %68 = vector.broadcast %cst_16 : f32 to vector<8x128xf32>
    %69 = arith.addf %68, %67 : vector<8x128xf32>
    %70 = arith.divf %68, %69 : vector<8x128xf32>
    %71 = math.tanh %65 : vector<8x128xf32>
    %72 = vector.extract_strided_slice %70 {offsets = [0, 0], sizes = [8, 32], strides = [1, 1]} : vector<8x128xf32> to vector<8x32xf32>
    %73 = vector.extract_strided_slice %70 {offsets = [0, 32], sizes = [8, 32], strides = [1, 1]} : vector<8x128xf32> to vector<8x32xf32>
    %74 = vector.extract_strided_slice %71 {offsets = [0, 64], sizes = [8, 32], strides = [1, 1]} : vector<8x128xf32> to vector<8x32xf32>
    %75 = vector.extract_strided_slice %70 {offsets = [0, 96], sizes = [8, 32], strides = [1, 1]} : vector<8x128xf32> to vector<8x32xf32>
    %76 = arith.mulf %73, %60 : vector<8x32xf32>
    %77 = arith.mulf %72, %74 : vector<8x32xf32>
    %78 = arith.addf %76, %77 : vector<8x32xf32>
    %79 = math.tanh %78 : vector<8x32xf32>
    %80 = arith.mulf %75, %79 : vector<8x32xf32>
    %81 = vector.extract_strided_slice %6 {offsets = [32, 0], sizes = [8, 128], strides = [1, 1]} : vector<64x128xf32> to vector<8x128xf32>
    %cst_17 = arith.constant dense<0.000000e+00> : vector<8x128xf32>
    %82 = tpu.matmul %80, %1, %cst_17 {dimension_numbers = #tpu.dot_dimension_numbers<[1], [0], [0], [1], [0, 0, 1, 1], [], []>} : vector<8x32xf32>, vector<32x128xf32>, vector<8x128xf32> -> vector<8x128xf32>
    %83 = arith.addf %81, %82 : vector<8x128xf32>
    %84 = arith.negf %83 : vector<8x128xf32>
    %85 = math.exp %84 : vector<8x128xf32>
    %cst_18 = arith.constant 1.000000e+00 : f32
    %86 = vector.broadcast %cst_18 : f32 to vector<8x128xf32>
    %87 = arith.addf %86, %85 : vector<8x128xf32>
    %88 = arith.divf %86, %87 : vector<8x128xf32>
    %89 = math.tanh %83 : vector<8x128xf32>
    %90 = vector.extract_strided_slice %88 {offsets = [0, 0], sizes = [8, 32], strides = [1, 1]} : vector<8x128xf32> to vector<8x32xf32>
    %91 = vector.extract_strided_slice %88 {offsets = [0, 32], sizes = [8, 32], strides = [1, 1]} : vector<8x128xf32> to vector<8x32xf32>
    %92 = vector.extract_strided_slice %89 {offsets = [0, 64], sizes = [8, 32], strides = [1, 1]} : vector<8x128xf32> to vector<8x32xf32>
    %93 = vector.extract_strided_slice %88 {offsets = [0, 96], sizes = [8, 32], strides = [1, 1]} : vector<8x128xf32> to vector<8x32xf32>
    %94 = arith.mulf %91, %78 : vector<8x32xf32>
    %95 = arith.mulf %90, %92 : vector<8x32xf32>
    %96 = arith.addf %94, %95 : vector<8x32xf32>
    %97 = math.tanh %96 : vector<8x32xf32>
    %98 = arith.mulf %93, %97 : vector<8x32xf32>
    %99 = vector.extract_strided_slice %6 {offsets = [40, 0], sizes = [8, 128], strides = [1, 1]} : vector<64x128xf32> to vector<8x128xf32>
    %cst_19 = arith.constant dense<0.000000e+00> : vector<8x128xf32>
    %100 = tpu.matmul %98, %1, %cst_19 {dimension_numbers = #tpu.dot_dimension_numbers<[1], [0], [0], [1], [0, 0, 1, 1], [], []>} : vector<8x32xf32>, vector<32x128xf32>, vector<8x128xf32> -> vector<8x128xf32>
    %101 = arith.addf %99, %100 : vector<8x128xf32>
    %102 = arith.negf %101 : vector<8x128xf32>
    %103 = math.exp %102 : vector<8x128xf32>
    %cst_20 = arith.constant 1.000000e+00 : f32
    %104 = vector.broadcast %cst_20 : f32 to vector<8x128xf32>
    %105 = arith.addf %104, %103 : vector<8x128xf32>
    %106 = arith.divf %104, %105 : vector<8x128xf32>
    %107 = math.tanh %101 : vector<8x128xf32>
    %108 = vector.extract_strided_slice %106 {offsets = [0, 0], sizes = [8, 32], strides = [1, 1]} : vector<8x128xf32> to vector<8x32xf32>
    %109 = vector.extract_strided_slice %106 {offsets = [0, 32], sizes = [8, 32], strides = [1, 1]} : vector<8x128xf32> to vector<8x32xf32>
    %110 = vector.extract_strided_slice %107 {offsets = [0, 64], sizes = [8, 32], strides = [1, 1]} : vector<8x128xf32> to vector<8x32xf32>
    %111 = vector.extract_strided_slice %106 {offsets = [0, 96], sizes = [8, 32], strides = [1, 1]} : vector<8x128xf32> to vector<8x32xf32>
    %112 = arith.mulf %109, %96 : vector<8x32xf32>
    %113 = arith.mulf %108, %110 : vector<8x32xf32>
    %114 = arith.addf %112, %113 : vector<8x32xf32>
    %115 = math.tanh %114 : vector<8x32xf32>
    %116 = arith.mulf %111, %115 : vector<8x32xf32>
    %117 = vector.extract_strided_slice %6 {offsets = [48, 0], sizes = [8, 128], strides = [1, 1]} : vector<64x128xf32> to vector<8x128xf32>
    %cst_21 = arith.constant dense<0.000000e+00> : vector<8x128xf32>
    %118 = tpu.matmul %116, %1, %cst_21 {dimension_numbers = #tpu.dot_dimension_numbers<[1], [0], [0], [1], [0, 0, 1, 1], [], []>} : vector<8x32xf32>, vector<32x128xf32>, vector<8x128xf32> -> vector<8x128xf32>
    %119 = arith.addf %117, %118 : vector<8x128xf32>
    %120 = arith.negf %119 : vector<8x128xf32>
    %121 = math.exp %120 : vector<8x128xf32>
    %cst_22 = arith.constant 1.000000e+00 : f32
    %122 = vector.broadcast %cst_22 : f32 to vector<8x128xf32>
    %123 = arith.addf %122, %121 : vector<8x128xf32>
    %124 = arith.divf %122, %123 : vector<8x128xf32>
    %125 = math.tanh %119 : vector<8x128xf32>
    %126 = vector.extract_strided_slice %124 {offsets = [0, 0], sizes = [8, 32], strides = [1, 1]} : vector<8x128xf32> to vector<8x32xf32>
    %127 = vector.extract_strided_slice %124 {offsets = [0, 32], sizes = [8, 32], strides = [1, 1]} : vector<8x128xf32> to vector<8x32xf32>
    %128 = vector.extract_strided_slice %125 {offsets = [0, 64], sizes = [8, 32], strides = [1, 1]} : vector<8x128xf32> to vector<8x32xf32>
    %129 = vector.extract_strided_slice %124 {offsets = [0, 96], sizes = [8, 32], strides = [1, 1]} : vector<8x128xf32> to vector<8x32xf32>
    %130 = arith.mulf %127, %114 : vector<8x32xf32>
    %131 = arith.mulf %126, %128 : vector<8x32xf32>
    %132 = arith.addf %130, %131 : vector<8x32xf32>
    %133 = math.tanh %132 : vector<8x32xf32>
    %134 = arith.mulf %129, %133 : vector<8x32xf32>
    %135 = vector.extract_strided_slice %6 {offsets = [56, 0], sizes = [8, 128], strides = [1, 1]} : vector<64x128xf32> to vector<8x128xf32>
    %cst_23 = arith.constant dense<0.000000e+00> : vector<8x128xf32>
    %136 = tpu.matmul %134, %1, %cst_23 {dimension_numbers = #tpu.dot_dimension_numbers<[1], [0], [0], [1], [0, 0, 1, 1], [], []>} : vector<8x32xf32>, vector<32x128xf32>, vector<8x128xf32> -> vector<8x128xf32>
    %137 = arith.addf %135, %136 : vector<8x128xf32>
    %138 = arith.negf %137 : vector<8x128xf32>
    %139 = math.exp %138 : vector<8x128xf32>
    %cst_24 = arith.constant 1.000000e+00 : f32
    %140 = vector.broadcast %cst_24 : f32 to vector<8x128xf32>
    %141 = arith.addf %140, %139 : vector<8x128xf32>
    %142 = arith.divf %140, %141 : vector<8x128xf32>
    %143 = math.tanh %137 : vector<8x128xf32>
    %144 = vector.extract_strided_slice %142 {offsets = [0, 0], sizes = [8, 32], strides = [1, 1]} : vector<8x128xf32> to vector<8x32xf32>
    %145 = vector.extract_strided_slice %142 {offsets = [0, 32], sizes = [8, 32], strides = [1, 1]} : vector<8x128xf32> to vector<8x32xf32>
    %146 = vector.extract_strided_slice %143 {offsets = [0, 64], sizes = [8, 32], strides = [1, 1]} : vector<8x128xf32> to vector<8x32xf32>
    %147 = vector.extract_strided_slice %142 {offsets = [0, 96], sizes = [8, 32], strides = [1, 1]} : vector<8x128xf32> to vector<8x32xf32>
    %148 = arith.mulf %145, %132 : vector<8x32xf32>
    %149 = arith.mulf %144, %146 : vector<8x32xf32>
    %150 = arith.addf %148, %149 : vector<8x32xf32>
    %151 = math.tanh %150 : vector<8x32xf32>
    %152 = arith.mulf %147, %151 : vector<8x32xf32>
    %153 = tpu.concatenate %26, %44, %62, %80, %98, %116, %134, %152 in 0 : vector<8x32xf32>, vector<8x32xf32>, vector<8x32xf32>, vector<8x32xf32>, vector<8x32xf32>, vector<8x32xf32>, vector<8x32xf32>, vector<8x32xf32> -> vector<64x32xf32>
    %c0_25 = arith.constant 0 : index
    %c0_26 = arith.constant 0 : index
    %154 = vector.load %arg5[%c0_25, %c0_26] : memref<32x32xf32, #tpu.memory_space<vmem>>, vector<32x32xf32>
    %cst_27 = arith.constant dense<0.000000e+00> : vector<64x32xf32>
    %155 = tpu.matmul %153, %154, %cst_27 {dimension_numbers = #tpu.dot_dimension_numbers<[1], [0], [0], [1], [0, 0, 1, 1], [], []>} : vector<64x32xf32>, vector<32x32xf32>, vector<64x32xf32> -> vector<64x32xf32>
    %c0_28 = arith.constant 0 : index
    %c0_29 = arith.constant 0 : index
    %156 = vector.load %arg6[%c0_28, %c0_29] : memref<1x32xf32, #tpu.memory_space<vmem>>, vector<1x32xf32>
    %157 = vector.broadcast %156 : vector<1x32xf32> to vector<64x32xf32>
    %158 = arith.addf %155, %157 : vector<64x32xf32>
    %c0_30 = arith.constant 0 : index
    %c0_31 = arith.constant 0 : index
    %159 = vector.load %arg1[%c0_30, %c0_31] : memref<64x16xf32, #tpu.memory_space<vmem>>, vector<64x16xf32>
    %c0_32 = arith.constant 0 : index
    %c0_33 = arith.constant 0 : index
    %160 = vector.load %arg7[%c0_32, %c0_33] : memref<16x32xf32, #tpu.memory_space<vmem>>, vector<16x32xf32>
    %cst_34 = arith.constant dense<0.000000e+00> : vector<64x32xf32>
    %161 = tpu.matmul %159, %160, %cst_34 {dimension_numbers = #tpu.dot_dimension_numbers<[1], [0], [0], [1], [0, 0, 1, 1], [], []>} : vector<64x16xf32>, vector<16x32xf32>, vector<64x32xf32> -> vector<64x32xf32>
    %c0_35 = arith.constant 0 : index
    %c0_36 = arith.constant 0 : index
    %162 = vector.load %arg8[%c0_35, %c0_36] : memref<1x32xf32, #tpu.memory_space<vmem>>, vector<1x32xf32>
    %163 = vector.broadcast %162 : vector<1x32xf32> to vector<64x32xf32>
    %164 = arith.addf %161, %163 : vector<64x32xf32>
    %cst_37 = arith.constant 0.000000e+00 : f32
    %165 = vector.broadcast %cst_37 : f32 to vector<64x32xf32>
    %166 = arith.maximumf %164, %165 : vector<64x32xf32>
    %c0_38 = arith.constant 0 : index
    %c0_39 = arith.constant 0 : index
    %167 = vector.load %arg9[%c0_38, %c0_39] : memref<32x32xf32, #tpu.memory_space<vmem>>, vector<32x32xf32>
    %cst_40 = arith.constant dense<0.000000e+00> : vector<64x32xf32>
    %168 = tpu.matmul %166, %167, %cst_40 {dimension_numbers = #tpu.dot_dimension_numbers<[1], [0], [0], [1], [0, 0, 1, 1], [], []>} : vector<64x32xf32>, vector<32x32xf32>, vector<64x32xf32> -> vector<64x32xf32>
    %c0_41 = arith.constant 0 : index
    %c0_42 = arith.constant 0 : index
    %169 = vector.load %arg10[%c0_41, %c0_42] : memref<1x32xf32, #tpu.memory_space<vmem>>, vector<1x32xf32>
    %170 = vector.broadcast %169 : vector<1x32xf32> to vector<64x32xf32>
    %171 = arith.addf %168, %170 : vector<64x32xf32>
    %cst_43 = arith.constant 0.000000e+00 : f32
    %172 = vector.broadcast %cst_43 : f32 to vector<64x32xf32>
    %173 = arith.maximumf %171, %172 : vector<64x32xf32>
    %174 = arith.mulf %173, %173 : vector<64x32xf32>
    %cst_44 = arith.constant dense<0.000000e+00> : vector<64xf32>
    %175 = vector.multi_reduction <add>, %174, %cst_44 [1] : vector<64x32xf32> to vector<64xf32>
    %176 = vector.shape_cast %175 : vector<64xf32> to vector<64x1xf32>
    %cst_45 = arith.constant 1.000000e-24 : f32
    %177 = vector.broadcast %cst_45 : f32 to vector<64x1xf32>
    %178 = arith.maximumf %176, %177 : vector<64x1xf32>
    %179 = math.rsqrt %178 : vector<64x1xf32>
    %180 = vector.broadcast %179 : vector<64x1xf32> to vector<64x32xf32>
    %181 = arith.mulf %173, %180 : vector<64x32xf32>
    %182 = arith.mulf %158, %181 : vector<64x32xf32>
    %cst_46 = arith.constant dense<0.000000e+00> : vector<64xf32>
    %183 = vector.multi_reduction <add>, %182, %cst_46 [1] : vector<64x32xf32> to vector<64xf32>
    %184 = vector.shape_cast %183 : vector<64xf32> to vector<64x1xf32>
    %185 = arith.negf %184 : vector<64x1xf32>
    %186 = math.exp %185 : vector<64x1xf32>
    %cst_47 = arith.constant 1.000000e+00 : f32
    %187 = vector.broadcast %cst_47 : f32 to vector<64x1xf32>
    %188 = arith.addf %187, %186 : vector<64x1xf32>
    %189 = arith.divf %187, %188 : vector<64x1xf32>
    %c0_48 = arith.constant 0 : index
    %c0_49 = arith.constant 0 : index
    %190 = vector.load %arg11[%c0_48, %c0_49] : memref<64x1xf32, #tpu.memory_space<vmem>>, vector<64x1xf32>
    tpu.vector_store %arg11[%c0_48, %c0_49], %189 {strides = array<i32>} : memref<64x1xf32, #tpu.memory_space<vmem>>, vector<64x1xf32>,
    return
  }
}

</mosaic_0001>

<llo_original>
// kernel: tpu_custom_call.1
$region0: #{tpu_custom_call.1}
  #allocation0 [shape = 'u32[]', space=smem, size = 0x4, offset = 0x4, fixed_abs, tag = 'smem constant byte address 0x4 - core index']
  #allocation1 [shape = 'u32[72,128]{1,0:T(1,128)}', space=vmem, size = 0x9000, scoped, tag = 'internal scratch']
  %s0 = inlined_call_operand.vmem [shape: f32[64,32], index: 0, kind: input, shape index: {}]
  %s1 = inlined_call_operand.vmem [shape: f32[64,16], index: 1, kind: input, shape index: {}]
  %s2 = inlined_call_operand.vmem [shape: f32[32,128], index: 2, kind: input, shape index: {}]
  %s3 = inlined_call_operand.vmem [shape: f32[32,128], index: 3, kind: input, shape index: {}]
  %s4 = inlined_call_operand.vmem [shape: f32[1,128], index: 4, kind: input, shape index: {}]
  %s5 = inlined_call_operand.vmem [shape: f32[32,32], index: 5, kind: input, shape index: {}]
  %s6 = inlined_call_operand.vmem [shape: f32[1,32], index: 6, kind: input, shape index: {}]
  %s7 = inlined_call_operand.vmem [shape: f32[16,32], index: 7, kind: input, shape index: {}]
  %s8 = inlined_call_operand.vmem [shape: f32[1,32], index: 8, kind: input, shape index: {}]
  %s9 = inlined_call_operand.vmem [shape: f32[32,32], index: 9, kind: input, shape index: {}]
  %s10 = inlined_call_operand.vmem [shape: f32[1,32], index: 10, kind: input, shape index: {}]
  %s11 = inlined_call_operand.vmem [shape: f32[64,1], index: 11, kind: output, shape index: {}]
  %s12 = sld [smem:[#allocation0]]
  $region54: #{tpu_custom_call.1} parent=0
    _
  %s14 = ssub.s32 1, %s12
  %s15 = scalar_select 0, %s14, %s12
  // Predicated region
  $region2: #{tpu_custom_call.1} parent=0 // pred_check
    _
  $region3: #{tpu_custom_call.1} parent=0 // pred_check_branch
    %17 = sbr.rel (0) target = $region5
  $region4: #{tpu_custom_call.1} parent=0 // pred_region
    _
  $region5: #{tpu_custom_call.1} parent=0 // pred_fallthru
    _
  // Predicated region
  $region6: #{tpu_custom_call.1} parent=0 // pred_check
    _
  $region7: #{tpu_custom_call.1} parent=0 // pred_check_branch
    %19 = sbr.rel (0) target = $region9
  $region8: #{tpu_custom_call.1} parent=0 // pred_region
    _
  $region9: #{tpu_custom_call.1} parent=0 // pred_fallthru
    _
  // Predicated region
  $region10: #{tpu_custom_call.1} parent=0 // pred_check
    _
  $region11: #{tpu_custom_call.1} parent=0 // pred_check_branch
    %21 = sbr.rel (0) target = $region13
  $region12: #{tpu_custom_call.1} parent=0 // pred_region
    _
  $region13: #{tpu_custom_call.1} parent=0 // pred_fallthru
    _
  // Predicated region
  $region14: #{tpu_custom_call.1} parent=0 // pred_check
    _
  $region15: #{tpu_custom_call.1} parent=0 // pred_check_branch
    %23 = sbr.rel (0) target = $region17
  $region16: #{tpu_custom_call.1} parent=0 // pred_region
    _
  $region17: #{tpu_custom_call.1} parent=0 // pred_fallthru
    _
  // Predicated region
  $region18: #{tpu_custom_call.1} parent=0 // pred_check
    _
  $region19: #{tpu_custom_call.1} parent=0 // pred_check_branch
    %25 = sbr.rel (0) target = $region21
  $region20: #{tpu_custom_call.1} parent=0 // pred_region
    _
  $region21: #{tpu_custom_call.1} parent=0 // pred_fallthru
    _
  // Predicated region
  $region22: #{tpu_custom_call.1} parent=0 // pred_check
    _
  $region23: #{tpu_custom_call.1} parent=0 // pred_check_branch
    %27 = sbr.rel (0) target = $region25
  $region24: #{tpu_custom_call.1} parent=0 // pred_region
    _
  $region25: #{tpu_custom_call.1} parent=0 // pred_fallthru
    _
  // Predicated region
  $region26: #{tpu_custom_call.1} parent=0 // pred_check
    _
  $region27: #{tpu_custom_call.1} parent=0 // pred_check_branch
    %29 = sbr.rel (0) target = $region29
  $region28: #{tpu_custom_call.1} parent=0 // pred_region
    _
  $region29: #{tpu_custom_call.1} parent=0 // pred_fallthru
    _
  // Predicated region
  $region30: #{tpu_custom_call.1} parent=0 // pred_check
    _
  $region31: #{tpu_custom_call.1} parent=0 // pred_check_branch
    %31 = sbr.rel (0) target = $region33
  $region32: #{tpu_custom_call.1} parent=0 // pred_region
    _
  $region33: #{tpu_custom_call.1} parent=0 // pred_fallthru
    _
  // Predicated region
  $region34: #{tpu_custom_call.1} parent=0 // pred_check
    _
  $region35: #{tpu_custom_call.1} parent=0 // pred_check_branch
    %33 = sbr.rel (0) target = $region37
  $region36: #{tpu_custom_call.1} parent=0 // pred_region
    _
  $region37: #{tpu_custom_call.1} parent=0 // pred_fallthru
    _
  // Predicated region
  $region38: #{tpu_custom_call.1} parent=0 // pred_check
    _
  $region39: #{tpu_custom_call.1} parent=0 // pred_check_branch
    %35 = sbr.rel (0) target = $region41
  $region40: #{tpu_custom_call.1} parent=0 // pred_region
    _
  $region41: #{tpu_custom_call.1} parent=0 // pred_fallthru
    _
  // Predicated region
  $region42: #{tpu_custom_call.1} parent=0 // pred_check
    _
  $region43: #{tpu_custom_call.1} parent=0 // pred_check_branch
    %37 = sbr.rel (0) target = $region45
  $region44: #{tpu_custom_call.1} parent=0 // pred_region
    _
  $region45: #{tpu_custom_call.1} parent=0 // pred_fallthru
    _
  %v38 = vld [vmem:[%s2] sm:$0xff]
  %v39 = vld [vmem:[%s2 + $0x8] sm:$0xff]
  %v40 = vld [vmem:[%s2 + $0x10] sm:$0xff]
  %v41 = vld [vmem:[%s2 + $0x18] sm:$0xff]
  %v42 = vld [vmem:[%s3] sm:$0xff]
  %v43 = vld [vmem:[%s3 + $0x8] sm:$0xff]
  %v44 = vld [vmem:[%s3 + $0x10] sm:$0xff]
  %v45 = vld [vmem:[%s3 + $0x18] sm:$0xff]
  %v46 = vld [vmem:[%s4] sm:$0x1]
  %v47 = vld [vmem:[%s0] sm:$0xff]
  %v48 = vld [vmem:[%s0 + $0x8] sm:$0xff]
  %v49 = vld [vmem:[%s0 + $0x10] sm:$0xff]
  %v50 = vld [vmem:[%s0 + $0x18] sm:$0xff]
  %v51 = vld [vmem:[%s0 + $0x20] sm:$0xff]
  %v52 = vld [vmem:[%s0 + $0x28] sm:$0xff]
  %v53 = vld [vmem:[%s0 + $0x30] sm:$0xff]
  %v54 = vld [vmem:[%s0 + $0x38] sm:$0xff]
  %v56 = vperm.slane %v46, 0
  %vm58 = vcmask 261120
  %v60 = vsel %vm58, %v47, 0
  %v63 = vsel %vm58, %v48, 0
  %v66 = vsel %vm58, %v49, 0
  %v69 = vsel %vm58, %v50, 0
  %v72 = vsel %vm58, %v51, 0
  %v75 = vsel %vm58, %v52, 0
  %v78 = vsel %vm58, %v53, 0
  %v81 = vsel %vm58, %v54, 0
  %83 = vmatpush.msra.mxu0 0.0
  %84 = vmatpush.msra.mxu0 0.0
  %85 = vmatpush.msra.mxu0 0.0
  %86 = vmatpush.msra.mxu0 0.0
  %87 = vmatpush.msra.mxu0 0.0
  %88 = vmatpush.msra.mxu0 0.0
  %89 = vmatpush.msra.mxu0 0.0
  %90 = vmatpush.msra.mxu0 0.0
  %91 = vmatpush.msra.mxu0 0.0
  %92 = vmatpush.msra.mxu0 0.0
  %93 = vmatpush.msra.mxu0 0.0
  %94 = vmatpush.msra.mxu0 0.0
  %95 = vmatpush.msra.mxu0 %v41
  %96 = vmatpush.msra.mxu0 %v40
  %97 = vmatpush.msra.mxu0 %v39
  %98 = vmatpush.msra.mxu0 %v38
  %99 = vmatmul.f32.gmra.mxu0 %v60
  %v100 = vpop.f32.mrf.mxu0
  %v101 = vadd.f32 %v56, %v100
  %102 = vmatmul.f32.gmra.mxu0 %v63
  %v103 = vpop.f32.mrf.mxu0
  %v104 = vadd.f32 %v56, %v103
  %105 = vmatmul.f32.gmra.mxu0 %v66
  %v106 = vpop.f32.mrf.mxu0
  %v107 = vadd.f32 %v56, %v106
  %108 = vmatmul.f32.gmra.mxu0 %v69
  %v109 = vpop.f32.mrf.mxu0
  %v110 = vadd.f32 %v56, %v109
  %111 = vmatmul.f32.gmra.mxu0 %v72
  %v112 = vpop.f32.mrf.mxu0
  %v113 = vadd.f32 %v56, %v112
  %114 = vmatmul.f32.gmra.mxu0 %v75
  %v115 = vpop.f32.mrf.mxu0
  %v116 = vadd.f32 %v56, %v115
  %117 = vmatmul.f32.gmra.mxu0 %v78
  %v118 = vpop.f32.mrf.mxu0
  %v119 = vadd.f32 %v56, %v118
  %120 = vmatmul.f32.gmra.mxu0 %v81
  %v121 = vpop.f32.mrf.mxu0
  %v122 = vadd.f32 %v56, %v121
  %123 = vdwg.mxu0
  %v125 = vsel %vm58, 0.0, 0
  %127 = vmatpush.msra.mxu0 0.0
  %128 = vmatpush.msra.mxu0 0.0
  %129 = vmatpush.msra.mxu0 0.0
  %130 = vmatpush.msra.mxu0 0.0
  %131 = vmatpush.msra.mxu0 0.0
  %132 = vmatpush.msra.mxu0 0.0
  %133 = vmatpush.msra.mxu0 0.0
  %134 = vmatpush.msra.mxu0 0.0
  %135 = vmatpush.msra.mxu0 0.0
  %136 = vmatpush.msra.mxu0 0.0
  %137 = vmatpush.msra.mxu0 0.0
  %138 = vmatpush.msra.mxu0 0.0
  %139 = vmatpush.msra.mxu0 %v45
  %140 = vmatpush.msra.mxu0 %v44
  %141 = vmatpush.msra.mxu0 %v43
  %142 = vmatpush.msra.mxu0 %v42
  %143 = vmatmul.f32.gmra.mxu0 %v125
  %v144 = vpop.f32.mrf.mxu0
  %v145 = vadd.f32 0.0, %v144
  %146 = vdwg.mxu0
  %v147 = vadd.f32 %v101, %v145
  %v148 = vxor.u32 %v147, 2147483648
  %v149 = vmul.f32 %v148, 1.442695
  %v150 = vpow.pop %v149
  %v151 = vadd.f32 %v150, 1.0
  %v152 = vrcp.pop %v151
  %v153 = vmul.f32 %v151, %v152
  %v154 = vsub.f32 1.0, %v153
  %v155 = vmul.f32 %v152, %v154
  %v156 = vadd.f32 %v152, %v155
  %vm157 = vweird.f32 %v151
  %vm158 = vweird.f32 %v152
  %vm159 = vmor %vm157, %vm158
  %v160 = vsel %vm159, %v152, %v156
  %v161 = vand.u32 2147483647, %v151
  %vm162 = vcmp.eq.f32.partialorder %v161, 8.507059e+37
  %v163 = vand.u32 %v151, 2147483648
  %v164 = vor.u32 1.1754944e-38, %v163
  %v165 = vsel %vm162, %v164, %v160
  %v166 = vmul.f32 1.0, %v165
  %v167 = vtanh.pop %v147
  %v168 = vmul.f32 %v166, 0.0
  %170 = vrot.lane.b32.xlu0 %v167, 64
  %v171 = vpop.permute.xlu0 %170
  %v173 = vmul.f32 %v166, %v171
  %175 = vrot.lane.b32.xlu0 %v173, 32
  %v176 = vpop.permute.xlu0 %175
  %v178 = vadd.f32 %v168, %v176
  %v179 = vtanh.pop %v178
  %181 = vrot.lane.b32.xlu0 %v179, 64
  %v182 = vpop.permute.xlu0 %181
  %v184 = vmul.f32 %v166, %v182
  %186 = vrot.lane.b32.xlu0 %v184, 32
  %v187 = vpop.permute.xlu0 %186
  %v188 = vsel %vm58, %v187, 0
  %190 = vmatpush.msra.mxu0 0.0
  %191 = vmatpush.msra.mxu0 0.0
  %192 = vmatpush.msra.mxu0 0.0
  %193 = vmatpush.msra.mxu0 0.0
  %194 = vmatpush.msra.mxu0 0.0
  %195 = vmatpush.msra.mxu0 0.0
  %196 = vmatpush.msra.mxu0 0.0
  %197 = vmatpush.msra.mxu0 0.0
  %198 = vmatpush.msra.mxu0 0.0
  %199 = vmatpush.msra.mxu0 0.0
  %200 = vmatpush.msra.mxu0 0.0
  %201 = vmatpush.msra.mxu0 0.0
  %202 = vmatpush.msra.mxu0 %v45
  %203 = vmatpush.msra.mxu0 %v44
  %204 = vmatpush.msra.mxu0 %v43
  %205 = vmatpush.msra.mxu0 %v42
  %206 = vmatmul.f32.gmra.mxu0 %v188
  %v207 = vpop.f32.mrf.mxu0
  %v208 = vadd.f32 0.0, %v207
  %209 = vdwg.mxu0
  %v210 = vadd.f32 %v104, %v208
  %v211 = vxor.u32 %v210, 2147483648
  %v212 = vmul.f32 %v211, 1.442695
  %v213 = vpow.pop %v212
  %v214 = vadd.f32 %v213, 1.0
  %v215 = vrcp.pop %v214
  %v216 = vmul.f32 %v214, %v215
  %v217 = vsub.f32 1.0, %v216
  %v218 = vmul.f32 %v215, %v217
  %v219 = vadd.f32 %v215, %v218
  %vm220 = vweird.f32 %v214
  %vm221 = vweird.f32 %v215
  %vm222 = vmor %vm220, %vm221
  %v223 = vsel %vm222, %v215, %v219
  %v224 = vand.u32 2147483647, %v214
  %vm225 = vcmp.eq.f32.partialorder %v224, 8.507059e+37
  %v226 = vand.u32 %v214, 2147483648
  %v227 = vor.u32 1.1754944e-38, %v226
  %v228 = vsel %vm225, %v227, %v223
  %v229 = vmul.f32 1.0, %v228
  %v230 = vtanh.pop %v210
  %v231 = vmul.f32 %v229, %v178
  %233 = vrot.lane.b32.xlu0 %v230, 64
  %v234 = vpop.permute.xlu0 %233
  %v236 = vmul.f32 %v229, %v234
  %238 = vrot.lane.b32.xlu0 %v236, 32
  %v239 = vpop.permute.xlu0 %238
  %v241 = vadd.f32 %v231, %v239
  %v242 = vtanh.pop %v241
  %244 = vrot.lane.b32.xlu0 %v242, 64
  %v245 = vpop.permute.xlu0 %244
  %v247 = vmul.f32 %v229, %v245
  %249 = vrot.lane.b32.xlu0 %v247, 32
  %v250 = vpop.permute.xlu0 %249
  %v251 = vsel %vm58, %v250, 0
  %253 = vmatpush.msra.mxu0 0.0
  %254 = vmatpush.msra.mxu0 0.0
  %255 = vmatpush.msra.mxu0 0.0
  %256 = vmatpush.msra.mxu0 0.0
  %257 = vmatpush.msra.mxu0 0.0
  %258 = vmatpush.msra.mxu0 0.0
  %259 = vmatpush.msra.mxu0 0.0
  %260 = vmatpush.msra.mxu0 0.0
  %261 = vmatpush.msra.mxu0 0.0
  %262 = vmatpush.msra.mxu0 0.0
  %263 = vmatpush.msra.mxu0 0.0
  %264 = vmatpush.msra.mxu0 0.0
  %265 = vmatpush.msra.mxu0 %v45
  %266 = vmatpush.msra.mxu0 %v44
  %267 = vmatpush.msra.mxu0 %v43
  %268 = vmatpush.msra.mxu0 %v42
  %269 = vmatmul.f32.gmra.mxu0 %v251
  %v270 = vpop.f32.mrf.mxu0
  %v271 = vadd.f32 0.0, %v270
  %272 = vdwg.mxu0
  %v273 = vadd.f32 %v107, %v271
  %v274 = vxor.u32 %v273, 2147483648
  %v275 = vmul.f32 %v274, 1.442695
  %v276 = vpow.pop %v275
  %v277 = vadd.f32 %v276, 1.0
  %v278 = vrcp.pop %v277
  %v279 = vmul.f32 %v277, %v278
  %v280 = vsub.f32 1.0, %v279
  %v281 = vmul.f32 %v278, %v280
  %v282 = vadd.f32 %v278, %v281
  %vm283 = vweird.f32 %v277
  %vm284 = vweird.f32 %v278
  %vm285 = vmor %vm283, %vm284
  %v286 = vsel %vm285, %v278, %v282
  %v287 = vand.u32 2147483647, %v277
  %vm288 = vcmp.eq.f32.partialorder %v287, 8.507059e+37
  %v289 = vand.u32 %v277, 2147483648
  %v290 = vor.u32 1.1754944e-38, %v289
  %v291 = vsel %vm288, %v290, %v286
  %v292 = vmul.f32 1.0, %v291
  %v293 = vtanh.pop %v273
  %v294 = vmul.f32 %v292, %v241
  %296 = vrot.lane.b32.xlu0 %v293, 64
  %v297 = vpop.permute.xlu0 %296
  %v299 = vmul.f32 %v292, %v297
  %301 = vrot.lane.b32.xlu0 %v299, 32
  %v302 = vpop.permute.xlu0 %301
  %v304 = vadd.f32 %v294, %v302
  %v305 = vtanh.pop %v304
  %307 = vrot.lane.b32.xlu0 %v305, 64
  %v308 = vpop.permute.xlu0 %307
  %v310 = vmul.f32 %v292, %v308
  %312 = vrot.lane.b32.xlu0 %v310, 32
  %v313 = vpop.permute.xlu0 %312
  %v314 = vsel %vm58, %v313, 0
  %316 = vmatpush.msra.mxu0 0.0
  %317 = vmatpush.msra.mxu0 0.0
  %318 = vmatpush.msra.mxu0 0.0
  %319 = vmatpush.msra.mxu0 0.0
  %320 = vmatpush.msra.mxu0 0.0
  %321 = vmatpush.msra.mxu0 0.0
  %322 = vmatpush.msra.mxu0 0.0
  %323 = vmatpush.msra.mxu0 0.0
  %324 = vmatpush.msra.mxu0 0.0
  %325 = vmatpush.msra.mxu0 0.0
  %326 = vmatpush.msra.mxu0 0.0
  %327 = vmatpush.msra.mxu0 0.0
  %328 = vmatpush.msra.mxu0 %v45
  %329 = vmatpush.msra.mxu0 %v44
  %330 = vmatpush.msra.mxu0 %v43
  %331 = vmatpush.msra.mxu0 %v42
  %332 = vmatmul.f32.gmra.mxu0 %v314
  %v333 = vpop.f32.mrf.mxu0
  %v334 = vadd.f32 0.0, %v333
  %335 = vdwg.mxu0
  %v336 = vadd.f32 %v110, %v334
  %v337 = vxor.u32 %v336, 2147483648
  %v338 = vmul.f32 %v337, 1.442695
  %v339 = vpow.pop %v338
  %v340 = vadd.f32 %v339, 1.0
  %v341 = vrcp.pop %v340
  %v342 = vmul.f32 %v340, %v341
  %v343 = vsub.f32 1.0, %v342
  %v344 = vmul.f32 %v341, %v343
  %v345 = vadd.f32 %v341, %v344
  %vm346 = vweird.f32 %v340
  %vm347 = vweird.f32 %v341
  %vm348 = vmor %vm346, %vm347
  %v349 = vsel %vm348, %v341, %v345
  %v350 = vand.u32 2147483647, %v340
  %vm351 = vcmp.eq.f32.partialorder %v350, 8.507059e+37
  %v352 = vand.u32 %v340, 2147483648
  %v353 = vor.u32 1.1754944e-38, %v352
  %v354 = vsel %vm351, %v353, %v349
  %v355 = vmul.f32 1.0, %v354
  %v356 = vtanh.pop %v336
  %v357 = vmul.f32 %v355, %v304
  %359 = vrot.lane.b32.xlu0 %v356, 64
  %v360 = vpop.permute.xlu0 %359
  %v362 = vmul.f32 %v355, %v360
  %364 = vrot.lane.b32.xlu0 %v362, 32
  %v365 = vpop.permute.xlu0 %364
  %v367 = vadd.f32 %v357, %v365
  %v368 = vtanh.pop %v367
  %370 = vrot.lane.b32.xlu0 %v368, 64
  %v371 = vpop.permute.xlu0 %370
  %v373 = vmul.f32 %v355, %v371
  %375 = vrot.lane.b32.xlu0 %v373, 32
  %v376 = vpop.permute.xlu0 %375
  %v377 = vsel %vm58, %v376, 0
  %379 = vmatpush.msra.mxu0 0.0
  %380 = vmatpush.msra.mxu0 0.0
  %381 = vmatpush.msra.mxu0 0.0
  %382 = vmatpush.msra.mxu0 0.0
  %383 = vmatpush.msra.mxu0 0.0
  %384 = vmatpush.msra.mxu0 0.0
  %385 = vmatpush.msra.mxu0 0.0
  %386 = vmatpush.msra.mxu0 0.0
  %387 = vmatpush.msra.mxu0 0.0
  %388 = vmatpush.msra.mxu0 0.0
  %389 = vmatpush.msra.mxu0 0.0
  %390 = vmatpush.msra.mxu0 0.0
  %391 = vmatpush.msra.mxu0 %v45
  %392 = vmatpush.msra.mxu0 %v44
  %393 = vmatpush.msra.mxu0 %v43
  %394 = vmatpush.msra.mxu0 %v42
  %395 = vmatmul.f32.gmra.mxu0 %v377
  %v396 = vpop.f32.mrf.mxu0
  %v397 = vadd.f32 0.0, %v396
  %398 = vdwg.mxu0
  %v399 = vadd.f32 %v113, %v397
  %v400 = vxor.u32 %v399, 2147483648
  %v401 = vmul.f32 %v400, 1.442695
  %v402 = vpow.pop %v401
  %v403 = vadd.f32 %v402, 1.0
  %v404 = vrcp.pop %v403
  %v405 = vmul.f32 %v403, %v404
  %v406 = vsub.f32 1.0, %v405
  %v407 = vmul.f32 %v404, %v406
  %v408 = vadd.f32 %v404, %v407
  %vm409 = vweird.f32 %v403
  %vm410 = vweird.f32 %v404
  %vm411 = vmor %vm409, %vm410
  %v412 = vsel %vm411, %v404, %v408
  %v413 = vand.u32 2147483647, %v403
  %vm414 = vcmp.eq.f32.partialorder %v413, 8.507059e+37
  %v415 = vand.u32 %v403, 2147483648
  %v416 = vor.u32 1.1754944e-38, %v415
  %v417 = vsel %vm414, %v416, %v412
  %v418 = vmul.f32 1.0, %v417
  %v419 = vtanh.pop %v399
  %v420 = vmul.f32 %v418, %v367
  %422 = vrot.lane.b32.xlu0 %v419, 64
  %v423 = vpop.permute.xlu0 %422
  %v425 = vmul.f32 %v418, %v423
  %427 = vrot.lane.b32.xlu0 %v425, 32
  %v428 = vpop.permute.xlu0 %427
  %v430 = vadd.f32 %v420, %v428
  %v431 = vtanh.pop %v430
  %433 = vrot.lane.b32.xlu0 %v431, 64
  %v434 = vpop.permute.xlu0 %433
  %v436 = vmul.f32 %v418, %v434
  %438 = vrot.lane.b32.xlu0 %v436, 32
  %v439 = vpop.permute.xlu0 %438
  %v440 = vsel %vm58, %v439, 0
  %442 = vmatpush.msra.mxu0 0.0
  %443 = vmatpush.msra.mxu0 0.0
  %444 = vmatpush.msra.mxu0 0.0
  %445 = vmatpush.msra.mxu0 0.0
  %446 = vmatpush.msra.mxu0 0.0
  %447 = vmatpush.msra.mxu0 0.0
  %448 = vmatpush.msra.mxu0 0.0
  %449 = vmatpush.msra.mxu0 0.0
  %450 = vmatpush.msra.mxu0 0.0
  %451 = vmatpush.msra.mxu0 0.0
  %452 = vmatpush.msra.mxu0 0.0
  %453 = vmatpush.msra.mxu0 0.0
  %454 = vmatpush.msra.mxu0 %v45
  %455 = vmatpush.msra.mxu0 %v44
  %456 = vmatpush.msra.mxu0 %v43
  %457 = vmatpush.msra.mxu0 %v42
  %458 = vmatmul.f32.gmra.mxu0 %v440
  %v459 = vpop.f32.mrf.mxu0
  %v460 = vadd.f32 0.0, %v459
  %461 = vdwg.mxu0
  %v462 = vadd.f32 %v116, %v460
  %v463 = vxor.u32 %v462, 2147483648
  %v464 = vmul.f32 %v463, 1.442695
  %v465 = vpow.pop %v464
  %v466 = vadd.f32 %v465, 1.0
  %v467 = vrcp.pop %v466
  %v468 = vmul.f32 %v466, %v467
  %v469 = vsub.f32 1.0, %v468
  %v470 = vmul.f32 %v467, %v469
  %v471 = vadd.f32 %v467, %v470
  %vm472 = vweird.f32 %v466
  %vm473 = vweird.f32 %v467
  %vm474 = vmor %vm472, %vm473
  %v475 = vsel %vm474, %v467, %v471
  %v476 = vand.u32 2147483647, %v466
  %vm477 = vcmp.eq.f32.partialorder %v476, 8.507059e+37
  %v478 = vand.u32 %v466, 2147483648
  %v479 = vor.u32 1.1754944e-38, %v478
  %v480 = vsel %vm477, %v479, %v475
  %v481 = vmul.f32 1.0, %v480
  %v482 = vtanh.pop %v462
  %v483 = vmul.f32 %v481, %v430
  %485 = vrot.lane.b32.xlu0 %v482, 64
  %v486 = vpop.permute.xlu0 %485
  %v488 = vmul.f32 %v481, %v486
  %490 = vrot.lane.b32.xlu0 %v488, 32
  %v491 = vpop.permute.xlu0 %490
  %v493 = vadd.f32 %v483, %v491
  %v494 = vtanh.pop %v493
  %496 = vrot.lane.b32.xlu0 %v494, 64
  %v497 = vpop.permute.xlu0 %496
  %v499 = vmul.f32 %v481, %v497
  %501 = vrot.lane.b32.xlu0 %v499, 32
  %v502 = vpop.permute.xlu0 %501
  %v503 = vsel %vm58, %v502, 0
  %505 = vmatpush.msra.mxu0 0.0
  %506 = vmatpush.msra.mxu0 0.0
  %507 = vmatpush.msra.mxu0 0.0
  %508 = vmatpush.msra.mxu0 0.0
  %509 = vmatpush.msra.mxu0 0.0
  %510 = vmatpush.msra.mxu0 0.0
  %511 = vmatpush.msra.mxu0 0.0
  %512 = vmatpush.msra.mxu0 0.0
  %513 = vmatpush.msra.mxu0 0.0
  %514 = vmatpush.msra.mxu0 0.0
  %515 = vmatpush.msra.mxu0 0.0
  %516 = vmatpush.msra.mxu0 0.0
  %517 = vmatpush.msra.mxu0 %v45
  %518 = vmatpush.msra.mxu0 %v44
  %519 = vmatpush.msra.mxu0 %v43
  %520 = vmatpush.msra.mxu0 %v42
  %521 = vmatmul.f32.gmra.mxu0 %v503
  %v522 = vpop.f32.mrf.mxu0
  %v523 = vadd.f32 0.0, %v522
  %524 = vdwg.mxu0
  %v525 = vadd.f32 %v119, %v523
  %v526 = vxor.u32 %v525, 2147483648
  %v527 = vmul.f32 %v526, 1.442695
  %v528 = vpow.pop %v527
  %v529 = vadd.f32 %v528, 1.0
  %v530 = vrcp.pop %v529
  %v531 = vmul.f32 %v529, %v530
  %v532 = vsub.f32 1.0, %v531
  %v533 = vmul.f32 %v530, %v532
  %v534 = vadd.f32 %v530, %v533
  %vm535 = vweird.f32 %v529
  %vm536 = vweird.f32 %v530
  %vm537 = vmor %vm535, %vm536
  %v538 = vsel %vm537, %v530, %v534
  %v539 = vand.u32 2147483647, %v529
  %vm540 = vcmp.eq.f32.partialorder %v539, 8.507059e+37
  %v541 = vand.u32 %v529, 2147483648
  %v542 = vor.u32 1.1754944e-38, %v541
  %v543 = vsel %vm540, %v542, %v538
  %v544 = vmul.f32 1.0, %v543
  %v545 = vtanh.pop %v525
  %v546 = vmul.f32 %v544, %v493
  %548 = vrot.lane.b32.xlu0 %v545, 64
  %v549 = vpop.permute.xlu0 %548
  %v551 = vmul.f32 %v544, %v549
  %553 = vrot.lane.b32.xlu0 %v551, 32
  %v554 = vpop.permute.xlu0 %553
  %v556 = vadd.f32 %v546, %v554
  %v557 = vtanh.pop %v556
  %559 = vrot.lane.b32.xlu0 %v557, 64
  %v560 = vpop.permute.xlu0 %559
  %v562 = vmul.f32 %v544, %v560
  %564 = vrot.lane.b32.xlu0 %v562, 32
  %v565 = vpop.permute.xlu0 %564
  %v566 = vsel %vm58, %v565, 0
  %568 = vmatpush.msra.mxu0 0.0
  %569 = vmatpush.msra.mxu0 0.0
  %570 = vmatpush.msra.mxu0 0.0
  %571 = vmatpush.msra.mxu0 0.0
  %572 = vmatpush.msra.mxu0 0.0
  %573 = vmatpush.msra.mxu0 0.0
  %574 = vmatpush.msra.mxu0 0.0
  %575 = vmatpush.msra.mxu0 0.0
  %576 = vmatpush.msra.mxu0 0.0
  %577 = vmatpush.msra.mxu0 0.0
  %578 = vmatpush.msra.mxu0 0.0
  %579 = vmatpush.msra.mxu0 0.0
  %580 = vmatpush.msra.mxu0 %v45
  %581 = vmatpush.msra.mxu0 %v44
  %582 = vmatpush.msra.mxu0 %v43
  %583 = vmatpush.msra.mxu0 %v42
  %584 = vmatmul.f32.gmra.mxu0 %v566
  %v585 = vpop.f32.mrf.mxu0
  %v586 = vadd.f32 0.0, %v585
  %587 = vdwg.mxu0
  %v588 = vadd.f32 %v122, %v586
  %v589 = vxor.u32 %v588, 2147483648
  %v590 = vmul.f32 %v589, 1.442695
  %v591 = vpow.pop %v590
  %v592 = vadd.f32 %v591, 1.0
  %v593 = vrcp.pop %v592
  %v594 = vmul.f32 %v592, %v593
  %v595 = vsub.f32 1.0, %v594
  %v596 = vmul.f32 %v593, %v595
  %v597 = vadd.f32 %v593, %v596
  %vm598 = vweird.f32 %v592
  %vm599 = vweird.f32 %v593
  %vm600 = vmor %vm598, %vm599
  %v601 = vsel %vm600, %v593, %v597
  %v602 = vand.u32 2147483647, %v592
  %vm603 = vcmp.eq.f32.partialorder %v602, 8.507059e+37
  %v604 = vand.u32 %v592, 2147483648
  %v605 = vor.u32 1.1754944e-38, %v604
  %v606 = vsel %vm603, %v605, %v601
  %v607 = vmul.f32 1.0, %v606
  %v608 = vtanh.pop %v588
  %v609 = vmul.f32 %v607, %v556
  %611 = vrot.lane.b32.xlu0 %v608, 64
  %v612 = vpop.permute.xlu0 %611
  %v614 = vmul.f32 %v607, %v612
  %616 = vrot.lane.b32.xlu0 %v614, 32
  %v617 = vpop.permute.xlu0 %616
  %v619 = vadd.f32 %v609, %v617
  %v620 = vtanh.pop %v619
  %622 = vrot.lane.b32.xlu0 %v620, 64
  %v623 = vpop.permute.xlu0 %622
  %v625 = vmul.f32 %v607, %v623
  %v626 = vld [vmem:[%s5] sm:$0xff]
  %v627 = vld [vmem:[%s5 + $0x8] sm:$0xff]
  %v628 = vld [vmem:[%s5 + $0x10] sm:$0xff]
  %v629 = vld [vmem:[%s5 + $0x18] sm:$0xff]
  %v630 = vld [vmem:[%s6] sm:$0x1]
  %v632 = vperm.slane %v630, 0
  %635 = vrot.lane.b32.xlu0 %v625, 32
  %v636 = vpop.permute.xlu0 %635
  %v637 = vsel %vm58, %v636, 0
  %639 = vmatpush.msra.mxu0 0.0
  %640 = vmatpush.msra.mxu0 0.0
  %641 = vmatpush.msra.mxu0 0.0
  %642 = vmatpush.msra.mxu0 0.0
  %643 = vmatpush.msra.mxu0 0.0
  %644 = vmatpush.msra.mxu0 0.0
  %645 = vmatpush.msra.mxu0 0.0
  %646 = vmatpush.msra.mxu0 0.0
  %647 = vmatpush.msra.mxu0 0.0
  %648 = vmatpush.msra.mxu0 0.0
  %649 = vmatpush.msra.mxu0 0.0
  %650 = vmatpush.msra.mxu0 0.0
  %651 = vmatpush.msra.mxu0 %v629
  %652 = vmatpush.msra.mxu0 %v628
  %653 = vmatpush.msra.mxu0 %v627
  %654 = vmatpush.msra.mxu0 %v626
  %655 = vmatmul.f32.gmra.mxu0 %v188
  %v656 = vpop.f32.mrf.mxu0
  %v657 = vadd.f32 %v632, %v656
  %658 = vmatmul.f32.gmra.mxu0 %v251
  %v659 = vpop.f32.mrf.mxu0
  %v660 = vadd.f32 %v632, %v659
  %661 = vmatmul.f32.gmra.mxu0 %v314
  %v662 = vpop.f32.mrf.mxu0
  %v663 = vadd.f32 %v632, %v662
  %664 = vmatmul.f32.gmra.mxu0 %v377
  %v665 = vpop.f32.mrf.mxu0
  %v666 = vadd.f32 %v632, %v665
  %667 = vmatmul.f32.gmra.mxu0 %v440
  %v668 = vpop.f32.mrf.mxu0
  %v669 = vadd.f32 %v632, %v668
  %670 = vmatmul.f32.gmra.mxu0 %v503
  %v671 = vpop.f32.mrf.mxu0
  %v672 = vadd.f32 %v632, %v671
  %673 = vmatmul.f32.gmra.mxu0 %v566
  %v674 = vpop.f32.mrf.mxu0
  %v675 = vadd.f32 %v632, %v674
  %676 = vmatmul.f32.gmra.mxu0 %v637
  %v677 = vpop.f32.mrf.mxu0
  %v678 = vadd.f32 %v632, %v677
  %679 = vdwg.mxu0
  %v680 = vld [vmem:[%s1] sm:$0xff]
  %v681 = vld [vmem:[%s1 + $0x8] sm:$0xff]
  %v682 = vld [vmem:[%s1 + $0x10] sm:$0xff]
  %v683 = vld [vmem:[%s1 + $0x18] sm:$0xff]
  %v684 = vld [vmem:[%s1 + $0x20] sm:$0xff]
  %v685 = vld [vmem:[%s1 + $0x28] sm:$0xff]
  %v686 = vld [vmem:[%s1 + $0x30] sm:$0xff]
  %v687 = vld [vmem:[%s1 + $0x38] sm:$0xff]
  %v688 = vld [vmem:[%s7] sm:$0xff]
  %v689 = vld [vmem:[%s7 + $0x8] sm:$0xff]
  %v690 = vld [vmem:[%s8] sm:$0x1]
  %v692 = vperm.slane %v690, 0
  %vm694 = vcmask 130048
  %v696 = vsel %vm694, %v680, 0
  %v699 = vsel %vm694, %v681, 0
  %v702 = vsel %vm694, %v682, 0
  %v705 = vsel %vm694, %v683, 0
  %v708 = vsel %vm694, %v684, 0
  %v711 = vsel %vm694, %v685, 0
  %v714 = vsel %vm694, %v686, 0
  %v717 = vsel %vm694, %v687, 0
  %719 = vmatpush.msra.mxu0 0.0
  %720 = vmatpush.msra.mxu0 0.0
  %721 = vmatpush.msra.mxu0 0.0
  %722 = vmatpush.msra.mxu0 0.0
  %723 = vmatpush.msra.mxu0 0.0
  %724 = vmatpush.msra.mxu0 0.0
  %725 = vmatpush.msra.mxu0 0.0
  %726 = vmatpush.msra.mxu0 0.0
  %727 = vmatpush.msra.mxu0 0.0
  %728 = vmatpush.msra.mxu0 0.0
  %729 = vmatpush.msra.mxu0 0.0
  %730 = vmatpush.msra.mxu0 0.0
  %731 = vmatpush.msra.mxu0 0.0
  %732 = vmatpush.msra.mxu0 0.0
  %733 = vmatpush.msra.mxu0 %v689
  %734 = vmatpush.msra.mxu0 %v688
  %735 = vmatmul.f32.gmra.mxu0 %v696
  %v736 = vpop.f32.mrf.mxu0
  %v737 = vadd.f32 %v692, %v736
  %738 = vmatmul.f32.gmra.mxu0 %v699
  %v739 = vpop.f32.mrf.mxu0
  %v740 = vadd.f32 %v692, %v739
  %741 = vmatmul.f32.gmra.mxu0 %v702
  %v742 = vpop.f32.mrf.mxu0
  %v743 = vadd.f32 %v692, %v742
  %744 = vmatmul.f32.gmra.mxu0 %v705
  %v745 = vpop.f32.mrf.mxu0
  %v746 = vadd.f32 %v692, %v745
  %747 = vmatmul.f32.gmra.mxu0 %v708
  %v748 = vpop.f32.mrf.mxu0
  %v749 = vadd.f32 %v692, %v748
  %750 = vmatmul.f32.gmra.mxu0 %v711
  %v751 = vpop.f32.mrf.mxu0
  %v752 = vadd.f32 %v692, %v751
  %753 = vmatmul.f32.gmra.mxu0 %v714
  %v754 = vpop.f32.mrf.mxu0
  %v755 = vadd.f32 %v692, %v754
  %756 = vmatmul.f32.gmra.mxu0 %v717
  %v757 = vpop.f32.mrf.mxu0
  %v758 = vadd.f32 %v692, %v757
  %759 = vdwg.mxu0
  %v760 = vmax.f32 %v737, 0.0
  %v761 = vmax.f32 %v740, 0.0
  %v762 = vmax.f32 %v743, 0.0
  %v763 = vmax.f32 %v746, 0.0
  %v764 = vmax.f32 %v749, 0.0
  %v765 = vmax.f32 %v752, 0.0
  %v766 = vmax.f32 %v755, 0.0
  %v767 = vmax.f32 %v758, 0.0
  %v768 = vld [vmem:[%s9] sm:$0xff]
  %v769 = vld [vmem:[%s9 + $0x8] sm:$0xff]
  %v770 = vld [vmem:[%s9 + $0x10] sm:$0xff]
  %v771 = vld [vmem:[%s9 + $0x18] sm:$0xff]
  %v772 = vld [vmem:[%s10] sm:$0x1]
  %v774 = vperm.slane %v772, 0
  %v777 = vsel %vm58, %v760, 0
  %v780 = vsel %vm58, %v761, 0
  %v783 = vsel %vm58, %v762, 0
  %v786 = vsel %vm58, %v763, 0
  %v789 = vsel %vm58, %v764, 0
  %v792 = vsel %vm58, %v765, 0
  %v795 = vsel %vm58, %v766, 0
  %v798 = vsel %vm58, %v767, 0
  %800 = vmatpush.msra.mxu0 0.0
  %801 = vmatpush.msra.mxu0 0.0
  %802 = vmatpush.msra.mxu0 0.0
  %803 = vmatpush.msra.mxu0 0.0
  %804 = vmatpush.msra.mxu0 0.0
  %805 = vmatpush.msra.mxu0 0.0
  %806 = vmatpush.msra.mxu0 0.0
  %807 = vmatpush.msra.mxu0 0.0
  %808 = vmatpush.msra.mxu0 0.0
  %809 = vmatpush.msra.mxu0 0.0
  %810 = vmatpush.msra.mxu0 0.0
  %811 = vmatpush.msra.mxu0 0.0
  %812 = vmatpush.msra.mxu0 %v771
  %813 = vmatpush.msra.mxu0 %v770
  %814 = vmatpush.msra.mxu0 %v769
  %815 = vmatpush.msra.mxu0 %v768
  %816 = vmatmul.f32.gmra.mxu0 %v777
  %v817 = vpop.f32.mrf.mxu0
  %v818 = vadd.f32 %v774, %v817
  %819 = vmatmul.f32.gmra.mxu0 %v780
  %v820 = vpop.f32.mrf.mxu0
  %v821 = vadd.f32 %v774, %v820
  %822 = vmatmul.f32.gmra.mxu0 %v783
  %v823 = vpop.f32.mrf.mxu0
  %v824 = vadd.f32 %v774, %v823
  %825 = vmatmul.f32.gmra.mxu0 %v786
  %v826 = vpop.f32.mrf.mxu0
  %v827 = vadd.f32 %v774, %v826
  %828 = vmatmul.f32.gmra.mxu0 %v789
  %v829 = vpop.f32.mrf.mxu0
  %v830 = vadd.f32 %v774, %v829
  %831 = vmatmul.f32.gmra.mxu0 %v792
  %v832 = vpop.f32.mrf.mxu0
  %v833 = vadd.f32 %v774, %v832
  %834 = vmatmul.f32.gmra.mxu0 %v795
  %v835 = vpop.f32.mrf.mxu0
  %v836 = vadd.f32 %v774, %v835
  %837 = vmatmul.f32.gmra.mxu0 %v798
  %v838 = vpop.f32.mrf.mxu0
  %v839 = vadd.f32 %v774, %v838
  %840 = vdwg.mxu0
  %v841 = vmax.f32 %v818, 0.0
  %v842 = vmax.f32 %v821, 0.0
  %v843 = vmax.f32 %v824, 0.0
  %v844 = vmax.f32 %v827, 0.0
  %v845 = vmax.f32 %v830, 0.0
  %v846 = vmax.f32 %v833, 0.0
  %v847 = vmax.f32 %v836, 0.0
  %v848 = vmax.f32 %v839, 0.0
  %v849 = vmul.f32 %v841, %v841
  %v850 = vmul.f32 %v842, %v842
  %v851 = vmul.f32 %v843, %v843
  %v852 = vmul.f32 %v844, %v844
  %v853 = vmul.f32 %v845, %v845
  %v854 = vmul.f32 %v846, %v846
  %v855 = vmul.f32 %v847, %v847
  %v856 = vmul.f32 %v848, %v848
  %v857 = vsel %vm58, %v849, 0.0
  %858 = vadd.xlane.f32.xlu0 %v857
  %v859 = vpop.xlane.xlu0 %858
  %v860 = vsel %vm58, %v850, 0.0
  %861 = vadd.xlane.f32.xlu0 %v860
  %v862 = vpop.xlane.xlu0 %861
  %v863 = vsel %vm58, %v851, 0.0
  %864 = vadd.xlane.f32.xlu0 %v863
  %v865 = vpop.xlane.xlu0 %864
  %v866 = vsel %vm58, %v852, 0.0
  %867 = vadd.xlane.f32.xlu0 %v866
  %v868 = vpop.xlane.xlu0 %867
  %v869 = vsel %vm58, %v853, 0.0
  %870 = vadd.xlane.f32.xlu0 %v869
  %v871 = vpop.xlane.xlu0 %870
  %v872 = vsel %vm58, %v854, 0.0
  %873 = vadd.xlane.f32.xlu0 %v872
  %v874 = vpop.xlane.xlu0 %873
  %v875 = vsel %vm58, %v855, 0.0
  %876 = vadd.xlane.f32.xlu0 %v875
  %v877 = vpop.xlane.xlu0 %876
  %v878 = vsel %vm58, %v856, 0.0
  %879 = vadd.xlane.f32.xlu0 %v878
  %v880 = vpop.xlane.xlu0 %879
  %v881 = vmax.f32 %v859, 1e-24
  %v882 = vmax.f32 %v862, 1e-24
  %v883 = vmax.f32 %v865, 1e-24
  %v884 = vmax.f32 %v868, 1e-24
  %v885 = vmax.f32 %v871, 1e-24
  %v886 = vmax.f32 %v874, 1e-24
  %v887 = vmax.f32 %v877, 1e-24
  %v888 = vmax.f32 %v880, 1e-24
  %v889 = vrsqrt.pop %v881
  %v890 = vmul.f32 %v889, %v881
  %v891 = vmul.f32 %v890, %v889
  %v892 = vmul.f32 0.5, %v891
  %v893 = vsub.f32 1.5, %v892
  %v894 = vmul.f32 %v889, %v893
  %vm895 = vweird.f32 %v881
  %vm896 = vweird.f32 %v889
  %vm897 = vmor %vm895, %vm896
  %v898 = vsel %vm897, %v889, %v894
  %v899 = vrsqrt.pop %v882
  %v900 = vmul.f32 %v899, %v882
  %v901 = vmul.f32 %v900, %v899
  %v902 = vmul.f32 0.5, %v901
  %v903 = vsub.f32 1.5, %v902
  %v904 = vmul.f32 %v899, %v903
  %vm905 = vweird.f32 %v882
  %vm906 = vweird.f32 %v899
  %vm907 = vmor %vm905, %vm906
  %v908 = vsel %vm907, %v899, %v904
  %v909 = vrsqrt.pop %v883
  %v910 = vmul.f32 %v909, %v883
  %v911 = vmul.f32 %v910, %v909
  %v912 = vmul.f32 0.5, %v911
  %v913 = vsub.f32 1.5, %v912
  %v914 = vmul.f32 %v909, %v913
  %vm915 = vweird.f32 %v883
  %vm916 = vweird.f32 %v909
  %vm917 = vmor %vm915, %vm916
  %v918 = vsel %vm917, %v909, %v914
  %v919 = vrsqrt.pop %v884
  %v920 = vmul.f32 %v919, %v884
  %v921 = vmul.f32 %v920, %v919
  %v922 = vmul.f32 0.5, %v921
  %v923 = vsub.f32 1.5, %v922
  %v924 = vmul.f32 %v919, %v923
  %vm925 = vweird.f32 %v884
  %vm926 = vweird.f32 %v919
  %vm927 = vmor %vm925, %vm926
  %v928 = vsel %vm927, %v919, %v924
  %v929 = vrsqrt.pop %v885
  %v930 = vmul.f32 %v929, %v885
  %v931 = vmul.f32 %v930, %v929
  %v932 = vmul.f32 0.5, %v931
  %v933 = vsub.f32 1.5, %v932
  %v934 = vmul.f32 %v929, %v933
  %vm935 = vweird.f32 %v885
  %vm936 = vweird.f32 %v929
  %vm937 = vmor %vm935, %vm936
  %v938 = vsel %vm937, %v929, %v934
  %v939 = vrsqrt.pop %v886
  %v940 = vmul.f32 %v939, %v886
  %v941 = vmul.f32 %v940, %v939
  %v942 = vmul.f32 0.5, %v941
  %v943 = vsub.f32 1.5, %v942
  %v944 = vmul.f32 %v939, %v943
  %vm945 = vweird.f32 %v886
  %vm946 = vweird.f32 %v939
  %vm947 = vmor %vm945, %vm946
  %v948 = vsel %vm947, %v939, %v944
  %v949 = vrsqrt.pop %v887
  %v950 = vmul.f32 %v949, %v887
  %v951 = vmul.f32 %v950, %v949
  %v952 = vmul.f32 0.5, %v951
  %v953 = vsub.f32 1.5, %v952
  %v954 = vmul.f32 %v949, %v953
  %vm955 = vweird.f32 %v887
  %vm956 = vweird.f32 %v949
  %vm957 = vmor %vm955, %vm956
  %v958 = vsel %vm957, %v949, %v954
  %v959 = vrsqrt.pop %v888
  %v960 = vmul.f32 %v959, %v888
  %v961 = vmul.f32 %v960, %v959
  %v962 = vmul.f32 0.5, %v961
  %v963 = vsub.f32 1.5, %v962
  %v964 = vmul.f32 %v959, %v963
  %vm965 = vweird.f32 %v888
  %vm966 = vweird.f32 %v959
  %vm967 = vmor %vm965, %vm966
  %v968 = vsel %vm967, %v959, %v964
  %v969 = vmul.f32 %v841, %v898
  %v970 = vmul.f32 %v842, %v908
  %v971 = vmul.f32 %v843, %v918
  %v972 = vmul.f32 %v844, %v928
  %v973 = vmul.f32 %v845, %v938
  %v974 = vmul.f32 %v846, %v948
  %v975 = vmul.f32 %v847, %v958
  %v976 = vmul.f32 %v848, %v968
  %v977 = vmul.f32 %v657, %v969
  %v978 = vmul.f32 %v660, %v970
  %v979 = vmul.f32 %v663, %v971
  %v980 = vmul.f32 %v666, %v972
  %v981 = vmul.f32 %v669, %v973
  %v982 = vmul.f32 %v672, %v974
  %v983 = vmul.f32 %v675, %v975
  %v984 = vmul.f32 %v678, %v976
  %v985 = vsel %vm58, %v977, 0.0
  %986 = vadd.xlane.f32.xlu0 %v985
  %v987 = vpop.xlane.xlu0 %986
  %v988 = vsel %vm58, %v978, 0.0
  %989 = vadd.xlane.f32.xlu0 %v988
  %v990 = vpop.xlane.xlu0 %989
  %v991 = vsel %vm58, %v979, 0.0
  %992 = vadd.xlane.f32.xlu0 %v991
  %v993 = vpop.xlane.xlu0 %992
  %v994 = vsel %vm58, %v980, 0.0
  %995 = vadd.xlane.f32.xlu0 %v994
  %v996 = vpop.xlane.xlu0 %995
  %v997 = vsel %vm58, %v981, 0.0
  %998 = vadd.xlane.f32.xlu0 %v997
  %v999 = vpop.xlane.xlu0 %998
  %v1000 = vsel %vm58, %v982, 0.0
  %1001 = vadd.xlane.f32.xlu0 %v1000
  %v1002 = vpop.xlane.xlu0 %1001
  %v1003 = vsel %vm58, %v983, 0.0
  %1004 = vadd.xlane.f32.xlu0 %v1003
  %v1005 = vpop.xlane.xlu0 %1004
  %v1006 = vsel %vm58, %v984, 0.0
  %1007 = vadd.xlane.f32.xlu0 %v1006
  %v1008 = vpop.xlane.xlu0 %1007
  %v1009 = vxor.u32 %v987, 2147483648
  %v1010 = vxor.u32 %v990, 2147483648
  %v1011 = vxor.u32 %v993, 2147483648
  %v1012 = vxor.u32 %v996, 2147483648
  %v1013 = vxor.u32 %v999, 2147483648
  %v1014 = vxor.u32 %v1002, 2147483648
  %v1015 = vxor.u32 %v1005, 2147483648
  %v1016 = vxor.u32 %v1008, 2147483648
  %v1017 = vmul.f32 %v1009, 1.442695
  %v1018 = vpow.pop %v1017
  %v1019 = vmul.f32 %v1010, 1.442695
  %v1020 = vpow.pop %v1019
  %v1021 = vmul.f32 %v1011, 1.442695
  %v1022 = vpow.pop %v1021
  %v1023 = vmul.f32 %v1012, 1.442695
  %v1024 = vpow.pop %v1023
  %v1025 = vmul.f32 %v1013, 1.442695
  %v1026 = vpow.pop %v1025
  %v1027 = vmul.f32 %v1014, 1.442695
  %v1028 = vpow.pop %v1027
  %v1029 = vmul.f32 %v1015, 1.442695
  %v1030 = vpow.pop %v1029
  %v1031 = vmul.f32 %v1016, 1.442695
  %v1032 = vpow.pop %v1031
  %v1033 = vadd.f32 %v1018, 1.0
  %v1034 = vadd.f32 %v1020, 1.0
  %v1035 = vadd.f32 %v1022, 1.0
  %v1036 = vadd.f32 %v1024, 1.0
  %v1037 = vadd.f32 %v1026, 1.0
  %v1038 = vadd.f32 %v1028, 1.0
  %v1039 = vadd.f32 %v1030, 1.0
  %v1040 = vadd.f32 %v1032, 1.0
  %v1041 = vrcp.pop %v1033
  %v1042 = vmul.f32 %v1033, %v1041
  %v1043 = vsub.f32 1.0, %v1042
  %v1044 = vmul.f32 %v1041, %v1043
  %v1045 = vadd.f32 %v1041, %v1044
  %vm1046 = vweird.f32 %v1033
  %vm1047 = vweird.f32 %v1041
  %vm1048 = vmor %vm1046, %vm1047
  %v1049 = vsel %vm1048, %v1041, %v1045
  %v1050 = vand.u32 2147483647, %v1033
  %vm1051 = vcmp.eq.f32.partialorder %v1050, 8.507059e+37
  %v1052 = vand.u32 %v1033, 2147483648
  %v1053 = vor.u32 1.1754944e-38, %v1052
  %v1054 = vsel %vm1051, %v1053, %v1049
  %v1055 = vmul.f32 1.0, %v1054
  %v1056 = vrcp.pop %v1034
  %v1057 = vmul.f32 %v1034, %v1056
  %v1058 = vsub.f32 1.0, %v1057
  %v1059 = vmul.f32 %v1056, %v1058
  %v1060 = vadd.f32 %v1056, %v1059
  %vm1061 = vweird.f32 %v1034
  %vm1062 = vweird.f32 %v1056
  %vm1063 = vmor %vm1061, %vm1062
  %v1064 = vsel %vm1063, %v1056, %v1060
  %v1065 = vand.u32 2147483647, %v1034
  %vm1066 = vcmp.eq.f32.partialorder %v1065, 8.507059e+37
  %v1067 = vand.u32 %v1034, 2147483648
  %v1068 = vor.u32 1.1754944e-38, %v1067
  %v1069 = vsel %vm1066, %v1068, %v1064
  %v1070 = vmul.f32 1.0, %v1069
  %v1071 = vrcp.pop %v1035
  %v1072 = vmul.f32 %v1035, %v1071
  %v1073 = vsub.f32 1.0, %v1072
  %v1074 = vmul.f32 %v1071, %v1073
  %v1075 = vadd.f32 %v1071, %v1074
  %vm1076 = vweird.f32 %v1035
  %vm1077 = vweird.f32 %v1071
  %vm1078 = vmor %vm1076, %vm1077
  %v1079 = vsel %vm1078, %v1071, %v1075
  %v1080 = vand.u32 2147483647, %v1035
  %vm1081 = vcmp.eq.f32.partialorder %v1080, 8.507059e+37
  %v1082 = vand.u32 %v1035, 2147483648
  %v1083 = vor.u32 1.1754944e-38, %v1082
  %v1084 = vsel %vm1081, %v1083, %v1079
  %v1085 = vmul.f32 1.0, %v1084
  %v1086 = vrcp.pop %v1036
  %v1087 = vmul.f32 %v1036, %v1086
  %v1088 = vsub.f32 1.0, %v1087
  %v1089 = vmul.f32 %v1086, %v1088
  %v1090 = vadd.f32 %v1086, %v1089
  %vm1091 = vweird.f32 %v1036
  %vm1092 = vweird.f32 %v1086
  %vm1093 = vmor %vm1091, %vm1092
  %v1094 = vsel %vm1093, %v1086, %v1090
  %v1095 = vand.u32 2147483647, %v1036
  %vm1096 = vcmp.eq.f32.partialorder %v1095, 8.507059e+37
  %v1097 = vand.u32 %v1036, 2147483648
  %v1098 = vor.u32 1.1754944e-38, %v1097
  %v1099 = vsel %vm1096, %v1098, %v1094
  %v1100 = vmul.f32 1.0, %v1099
  %v1101 = vrcp.pop %v1037
  %v1102 = vmul.f32 %v1037, %v1101
  %v1103 = vsub.f32 1.0, %v1102
  %v1104 = vmul.f32 %v1101, %v1103
  %v1105 = vadd.f32 %v1101, %v1104
  %vm1106 = vweird.f32 %v1037
  %vm1107 = vweird.f32 %v1101
  %vm1108 = vmor %vm1106, %vm1107
  %v1109 = vsel %vm1108, %v1101, %v1105
  %v1110 = vand.u32 2147483647, %v1037
  %vm1111 = vcmp.eq.f32.partialorder %v1110, 8.507059e+37
  %v1112 = vand.u32 %v1037, 2147483648
  %v1113 = vor.u32 1.1754944e-38, %v1112
  %v1114 = vsel %vm1111, %v1113, %v1109
  %v1115 = vmul.f32 1.0, %v1114
  %v1116 = vrcp.pop %v1038
  %v1117 = vmul.f32 %v1038, %v1116
  %v1118 = vsub.f32 1.0, %v1117
  %v1119 = vmul.f32 %v1116, %v1118
  %v1120 = vadd.f32 %v1116, %v1119
  %vm1121 = vweird.f32 %v1038
  %vm1122 = vweird.f32 %v1116
  %vm1123 = vmor %vm1121, %vm1122
  %v1124 = vsel %vm1123, %v1116, %v1120
  %v1125 = vand.u32 2147483647, %v1038
  %vm1126 = vcmp.eq.f32.partialorder %v1125, 8.507059e+37
  %v1127 = vand.u32 %v1038, 2147483648
  %v1128 = vor.u32 1.1754944e-38, %v1127
  %v1129 = vsel %vm1126, %v1128, %v1124
  %v1130 = vmul.f32 1.0, %v1129
  %v1131 = vrcp.pop %v1039
  %v1132 = vmul.f32 %v1039, %v1131
  %v1133 = vsub.f32 1.0, %v1132
  %v1134 = vmul.f32 %v1131, %v1133
  %v1135 = vadd.f32 %v1131, %v1134
  %vm1136 = vweird.f32 %v1039
  %vm1137 = vweird.f32 %v1131
  %vm1138 = vmor %vm1136, %vm1137
  %v1139 = vsel %vm1138, %v1131, %v1135
  %v1140 = vand.u32 2147483647, %v1039
  %vm1141 = vcmp.eq.f32.partialorder %v1140, 8.507059e+37
  %v1142 = vand.u32 %v1039, 2147483648
  %v1143 = vor.u32 1.1754944e-38, %v1142
  %v1144 = vsel %vm1141, %v1143, %v1139
  %v1145 = vmul.f32 1.0, %v1144
  %v1146 = vrcp.pop %v1040
  %v1147 = vmul.f32 %v1040, %v1146
  %v1148 = vsub.f32 1.0, %v1147
  %v1149 = vmul.f32 %v1146, %v1148
  %v1150 = vadd.f32 %v1146, %v1149
  %vm1151 = vweird.f32 %v1040
  %vm1152 = vweird.f32 %v1146
  %vm1153 = vmor %vm1151, %vm1152
  %v1154 = vsel %vm1153, %v1146, %v1150
  %v1155 = vand.u32 2147483647, %v1040
  %vm1156 = vcmp.eq.f32.partialorder %v1155, 8.507059e+37
  %v1157 = vand.u32 %v1040, 2147483648
  %v1158 = vor.u32 1.1754944e-38, %v1157
  %v1159 = vsel %vm1156, %v1158, %v1154
  %v1160 = vmul.f32 1.0, %v1159
  %vm1161 = vcmask 7168
  %1162 = vst.msk [vmem:[%s11] sm:$0xff] %vm1161, %v1055
  %1163 = vst.msk [vmem:[%s11 + $0x8] sm:$0xff] %vm1161, %v1070
  %1164 = vst.msk [vmem:[%s11 + $0x10] sm:$0xff] %vm1161, %v1085
  %1165 = vst.msk [vmem:[%s11 + $0x18] sm:$0xff] %vm1161, %v1100
  %1166 = vst.msk [vmem:[%s11 + $0x20] sm:$0xff] %vm1161, %v1115
  %1167 = vst.msk [vmem:[%s11 + $0x28] sm:$0xff] %vm1161, %v1130
  %1168 = vst.msk [vmem:[%s11 + $0x30] sm:$0xff] %vm1161, %v1145
  %1169 = vst.msk [vmem:[%s11 + $0x38] sm:$0xff] %vm1161, %v1160
  // Predicated region
  $region46: #{tpu_custom_call.1} parent=0 // pred_check
    _
  $region47: #{tpu_custom_call.1} parent=0 // pred_check_branch
    %1171 = sbr.rel (0) target = $region49
  $region48: #{tpu_custom_call.1} parent=0 // pred_region
    _
  $region49: #{tpu_custom_call.1} parent=0 // pred_fallthru
    _
  // Predicated region
  $region50: #{tpu_custom_call.1} parent=0 // pred_check
    _
  $region51: #{tpu_custom_call.1} parent=0 // pred_check_branch
    %1173 = sbr.rel (0) target = $region53
  $region52: #{tpu_custom_call.1} parent=0 // pred_region
    _
  $region53: #{tpu_custom_call.1} parent=0 // pred_fallthru
    _

</llo_original>
